<compile_context>
chip_gen: v7x
topology: tpu7x:2x2x1
jax: 0.10.0
libtpu: 0.0.40
codegen_flags: <defaults>
</compile_context>

<pallas_src>
import functools

import jax
import jax.numpy as jnp
from jax.experimental import pallas as pl
from jax.experimental.pallas import tpu as pltpu


def autopad(k, p=None):
    if p is None:
        p = k // 2 if isinstance(k, int) else [x // 2 for x in k]
    return p


def _round_up(x, m):
    return (x + m - 1) // m * m


def _sublane_multiple(dtype):
    return {4: 8, 2: 16, 1: 32}.get(jnp.dtype(dtype).itemsize, 8)


# Scoped VMEM we request: safe on every generation (v5e/v6e physical 128 MiB,
# v7x physical 64 MiB) and large enough for ~13 MiB double-buffered activation
# tiles plus the resident weight/bias.
_VMEM_TARGET = 32 * 1024 * 1024
_VMEM_SLACK = 2 * 1024 * 1024  # headroom for compiler-internal scratch


def _classify_kernel(x_ref, w_ref, b_ref, o_ref, acc_ref, *, inv_hw):
    """Fused global-average-pool -> 1x1 conv (dense) -> bias.

    x_ref  : (1, BB, C1, HW_CHUNK)  activations (native dtype)
    w_ref  : (C1, C2p)              pre-transposed, lane-padded 1x1 conv weight
    b_ref  : (1, C2p)               lane-padded bias
    o_ref  : (1, BB, C2p)           output block
    acc_ref: (BB, C1) f32 scratch   running pooled sum across HW chunks
    """
    j = pl.program_id(1)

    @pl.when(j == 0)
    def _():
        acc_ref[...] = jnp.zeros_like(acc_ref)

    # Lane-dense reduce over the flattened spatial axis, accumulated in f32.
    acc_ref[...] += jnp.sum(x_ref[0], axis=-1, dtype=jnp.float32)

    @pl.when(j == pl.num_programs(1) - 1)
    def _():
        z = acc_ref[...] * inv_hw                                   # (BB, C1) mean
        out = jnp.dot(z, w_ref[...].astype(jnp.float32),
                      preferred_element_type=jnp.float32)           # (BB, C2p)
        out = out + b_ref[...].astype(jnp.float32)
        o_ref[0] = out.astype(o_ref.dtype)                          # unmasked lane-dense store


def _pick_batch_block(B, max_bb):
    """Largest divisor of B that fits the budget while guaranteeing >=2
    batch-parallel grid steps whenever B >= 2 (v7x TC sharding + pipelining)."""
    cap = max(1, min(max_bb, B // 2 if B >= 2 else B))
    bb = 1
    for d in range(1, cap + 1):
        if B % d == 0:
            bb = d
    return bb


def classify_pallas(x, weight, bias):
    """Classify.forward for a single input tensor.

    x:      (B, C1, H, W)
    weight: (C2, C1, 1, 1)    1x1 conv weight
    bias:   (C2,)
    returns (B, C2) in result_type(x, weight)
    """
    B, C1, H, W = x.shape
    C2 = weight.shape[0]
    assert weight.shape == (C2, C1, 1, 1), "only k=1, s=1, groups=1 supported"
    assert bias.shape == (C2,)

    HW = H * W
    itemsize = jnp.dtype(x.dtype).itemsize
    out_dtype = jnp.result_type(x.dtype, weight.dtype)

    # ---- one-time wrapper-side weight prep (tiny XLA ops) ------------------
    C2p = _round_up(C2, 128)                    # lane-dense weight columns / output
    w2 = weight.reshape(C2, C1).T               # (C1, C2): no in-kernel transpose
    b2 = bias.reshape(1, C2)
    if C2p != C2:
        w2 = jnp.pad(w2, ((0, 0), (0, C2p - C2)))
        b2 = jnp.pad(b2, ((0, 0), (0, C2p - C2)))

    # ---- honest VMEM accounting ((sublane,128) padding, all buffers) -------
    C1p = _round_up(C1, _sublane_multiple(x.dtype))
    w_bytes = _round_up(C1, _sublane_multiple(w2.dtype)) * C2p * jnp.dtype(w2.dtype).itemsize
    b_bytes = 8 * C2p * jnp.dtype(b2.dtype).itemsize
    fixed = 2 * (w_bytes + b_bytes)             # double-buffered resident weight/bias
    avail = _VMEM_TARGET - _VMEM_SLACK - fixed

    # Per-HW-position activation cost: double-buffered native block plus (for
    # sub-f32 dtypes) the transient f32 working copy consumed by the reduce.
    work_factor = 2 * itemsize + (0 if itemsize >= 4 else 4)
    col_bytes = C1p * work_factor
    per_elem_extra = 2 * C2p * 4 + C1p * 4      # output block (x2 buffers) + f32 acc
    HWp = _round_up(HW, 128)
    per_elem_full = HWp * col_bytes + per_elem_extra

    if per_elem_full <= avail:
        # Whole spatial extent of >=1 batch elements fits: single HW step.
        max_bb = max(1, avail // per_elem_full)
        BB = _pick_batch_block(B, max_bb)
        hw_chunk, n_hw = HW, 1                  # full-extent block: no 128 constraint
        x_in = x.reshape(B // BB, BB, C1, HW)   # metadata-only reshape
    else:
        # Large feature map: stream the flattened spatial axis in 128-aligned
        # chunks, accumulating the pooled sum in the VMEM scratch.
        BB = 1
        max_chunk = max(128, ((avail - per_elem_extra) // col_bytes) // 128 * 128)
        hw_chunk = 0
        if HW % 128 == 0:
            d = min(max_chunk, HW)
            while d >= 128:                     # largest 128-multiple divisor of HW
                if HW % d == 0:
                    hw_chunk = d
                    break
                d -= 128
        x_in = x.reshape(B, C1, HW)
        if hw_chunk == 0:
            # No aligned divisor: zero-pad the spatial axis (zeros are neutral
            # for the pooled sum).  One extra HBM pass only in this rare case.
            hw_chunk = min(max_chunk, HWp)
            HW_pad = _round_up(HW, hw_chunk)
            x_in = jnp.pad(x_in, ((0, 0), (0, 0), (0, HW_pad - HW)))
        n_hw = x_in.shape[-1] // hw_chunk
        x_in = x_in.reshape(B, 1, C1, x_in.shape[-1])

    nb = x_in.shape[0]
    grid = (nb, n_hw)
    kernel = functools.partial(_classify_kernel, inv_hw=1.0 / float(HW))

    out = pl.pallas_call(
        kernel,
        out_shape=jax.ShapeDtypeStruct((nb, BB, C2p), out_dtype),
        grid=grid,
        in_specs=[
            pl.BlockSpec((1, BB, C1, hw_chunk), lambda i, j: (i, 0, 0, j)),  # activations
            pl.BlockSpec((C1, C2p), lambda i, j: (0, 0)),                    # conv weight
            pl.BlockSpec((1, C2p), lambda i, j: (0, 0)),                     # conv bias
        ],
        out_specs=pl.BlockSpec((1, BB, C2p), lambda i, j: (i, 0, 0)),
        scratch_shapes=[pltpu.VMEM((BB, C1), jnp.float32)],
        compiler_params=pltpu.CompilerParams(
            dimension_semantics=("parallel", "arbitrary"),
            vmem_limit_bytes=_VMEM_TARGET,
        ),
    )(x_in, w2, b2)

    return out.reshape(B, C2p)[:, :C2]


if __name__ == "__main__":
    key = jax.random.PRNGKey(0)
    k_x, k_w, k_b = jax.random.split(key, 3)

    # Small shapes consistent with the module: (batch, channels, H, W) -> (batch, c2)
    B, C1, H, W = 2, 16, 16, 16
    C2, k = 32, 1

    x = jax.random.normal(k_x, (B, C1, H, W), dtype=jnp.float32)
    weight = jax.random.normal(k_w, (C2, C1, k, k), dtype=jnp.float32) * 0.1
    bias = jax.random.normal(k_b, (C2,), dtype=jnp.float32) * 0.1

    out = classify_pallas(x, weight, bias)
    out = jax.block_until_ready(out)

    # Pure-JAX reference: global avg pool -> 1x1 conv (dense) -> flatten.
    z_ref = jnp.mean(x, axis=(2, 3))                       # (B, C1)
    ref = z_ref @ weight.reshape(C2, C1).T + bias          # (B, C2)

    assert out.shape == (B, C2), f"bad output shape {out.shape}"
    assert jnp.allclose(out, ref, rtol=1e-5, atol=1e-5), "Pallas Classify mismatch vs reference"

    print("KERNEL_OK")
</pallas_src>

<mosaic_0001>
module attributes {stable_mosaic.version = 11 : i64} {
  func.func @_classify_kernel(%arg0: i32, %arg1: i32, %arg2: memref<1x1x16x256xf32, #tpu.memory_space<vmem>>, %arg3: memref<16x128xf32, #tpu.memory_space<vmem>>, %arg4: memref<1x128xf32, #tpu.memory_space<vmem>>, %arg5: memref<1x1x128xf32, #tpu.memory_space<vmem>>, %arg6: memref<1x16xf32, #tpu.memory_space<vmem>>) attributes {dimension_semantics = [#tpu.dimension_semantics<parallel>, #tpu.dimension_semantics<arbitrary>], iteration_bounds = array<i64: 2, 1>, scalar_prefetch = 0 : i64, scratch_operands = 1 : i64, tpu.core_type = #tpu.core_type<tc>, window_params = [{transform_indices = @transform_0, window_bounds = array<i64: 1, 1, 16, 256>}, {pipeline_mode = #tpu.pipeline_mode<synchronous>, transform_indices = @transform_1, window_bounds = array<i64: 16, 128>}, {pipeline_mode = #tpu.pipeline_mode<synchronous>, transform_indices = @transform_2, window_bounds = array<i64: 1, 128>}, {transform_indices = @transform_3, window_bounds = array<i64: 1, 1, 128>}]} {
    %c0_i32 = arith.constant 0 : i32
    %0 = arith.cmpi eq, %arg1, %c0_i32 : i32
    %1 = arith.extui %0 : i1 to i32
    %c0_i32_0 = arith.constant 0 : i32
    %2 = arith.cmpi ne, %1, %c0_i32_0 : i32
    scf.if %2 {
      %cst_10 = arith.constant 0.000000e+00 : f32
      %12 = vector.broadcast %cst_10 : f32 to vector<1x16xf32>
      %c0_11 = arith.constant 0 : index
      %c0_12 = arith.constant 0 : index
      %13 = vector.load %arg6[%c0_11, %c0_12] : memref<1x16xf32, #tpu.memory_space<vmem>>, vector<1x16xf32>
      tpu.vector_store %arg6[%c0_11, %c0_12], %12 {strides = array<i32>} : memref<1x16xf32, #tpu.memory_space<vmem>>, vector<1x16xf32>,
    } else {
    }
    %c0 = arith.constant 0 : index
    %c0_1 = arith.constant 0 : index
    %3 = vector.load %arg6[%c0, %c0_1] : memref<1x16xf32, #tpu.memory_space<vmem>>, vector<1x16xf32>
    %c0_2 = arith.constant 0 : index
    %c0_3 = arith.constant 0 : index
    %c0_4 = arith.constant 0 : index
    %c0_5 = arith.constant 0 : index
    %4 = vector.load %arg2[%c0_2, %c0_3, %c0_4, %c0_5] : memref<1x1x16x256xf32, #tpu.memory_space<vmem>>, vector<1x1x16x256xf32>
    %5 = vector.shape_cast %4 : vector<1x1x16x256xf32> to vector<1x16x256xf32>
    %cst = arith.constant dense<0.000000e+00> : vector<1x16xf32>
    %6 = vector.multi_reduction <add>, %5, %cst [2] : vector<1x16x256xf32> to vector<1x16xf32>
    %7 = arith.addf %3, %6 : vector<1x16xf32>
    %c0_6 = arith.constant 0 : index
    %c0_7 = arith.constant 0 : index
    %8 = vector.load %arg6[%c0_6, %c0_7] : memref<1x16xf32, #tpu.memory_space<vmem>>, vector<1x16xf32>
    tpu.vector_store %arg6[%c0_6, %c0_7], %7 {strides = array<i32>} : memref<1x16xf32, #tpu.memory_space<vmem>>, vector<1x16xf32>,
    %c0_i32_8 = arith.constant 0 : i32
    %9 = arith.cmpi eq, %arg1, %c0_i32_8 : i32
    %10 = arith.extui %9 : i1 to i32
    %c0_i32_9 = arith.constant 0 : i32
    %11 = arith.cmpi ne, %10, %c0_i32_9 : i32
    scf.if %11 {
      %c0_10 = arith.constant 0 : index
      %c0_11 = arith.constant 0 : index
      %12 = vector.load %arg6[%c0_10, %c0_11] : memref<1x16xf32, #tpu.memory_space<vmem>>, vector<1x16xf32>
      %cst_12 = arith.constant 3.906250e-03 : f32
      %13 = vector.broadcast %cst_12 : f32 to vector<1x16xf32>
      %14 = arith.mulf %12, %13 : vector<1x16xf32>
      %c0_13 = arith.constant 0 : index
      %c0_14 = arith.constant 0 : index
      %15 = vector.load %arg3[%c0_13, %c0_14] : memref<16x128xf32, #tpu.memory_space<vmem>>, vector<16x128xf32>
      %cst_15 = arith.constant dense<0.000000e+00> : vector<1x128xf32>
      %16 = tpu.matmul %14, %15, %cst_15 {dimension_numbers = #tpu.dot_dimension_numbers<[1], [0], [0], [1], [0, 0, 1, 1], [], []>} : vector<1x16xf32>, vector<16x128xf32>, vector<1x128xf32> -> vector<1x128xf32>
      %c0_16 = arith.constant 0 : index
      %c0_17 = arith.constant 0 : index
      %17 = vector.load %arg4[%c0_16, %c0_17] : memref<1x128xf32, #tpu.memory_space<vmem>>, vector<1x128xf32>
      %18 = arith.addf %16, %17 : vector<1x128xf32>
      %c0_18 = arith.constant 0 : index
      %c0_19 = arith.constant 0 : index
      %c0_20 = arith.constant 0 : index
      %19 = vector.load %arg5[%c0_18, %c0_19, %c0_20] : memref<1x1x128xf32, #tpu.memory_space<vmem>>, vector<1x1x128xf32>
      %20 = vector.shape_cast %19 : vector<1x1x128xf32> to vector<1x128xf32>
      %21 = vector.shape_cast %18 : vector<1x128xf32> to vector<1x1x128xf32>
      tpu.vector_store %arg5[%c0_18, %c0_19, %c0_20], %21 {strides = array<i32>} : memref<1x1x128xf32, #tpu.memory_space<vmem>>, vector<1x1x128xf32>,
    } else {
    }
    return
  }
  func.func @transform_0(%arg0: i32, %arg1: i32) -> (i32, i32, i32, i32) {
    %c0_i32 = arith.constant 0 : i32
    %c0_i32_0 = arith.constant 0 : i32
    %c0_i32_1 = arith.constant 0 : i32
    return %arg0, %c0_i32, %c0_i32_0, %arg1 : i32, i32, i32, i32
  }
  func.func @transform_1(%arg0: i32, %arg1: i32) -> (i32, i32) {
    %c0_i32 = arith.constant 0 : i32
    %c0_i32_0 = arith.constant 0 : i32
    %c0_i32_1 = arith.constant 0 : i32
    return %c0_i32, %c0_i32_0 : i32, i32
  }
  func.func @transform_2(%arg0: i32, %arg1: i32) -> (i32, i32) {
    %c0_i32 = arith.constant 0 : i32
    %c0_i32_0 = arith.constant 0 : i32
    %c0_i32_1 = arith.constant 0 : i32
    return %c0_i32, %c0_i32_0 : i32, i32
  }
  func.func @transform_3(%arg0: i32, %arg1: i32) -> (i32, i32, i32) {
    %c0_i32 = arith.constant 0 : i32
    %c0_i32_0 = arith.constant 0 : i32
    %c0_i32_1 = arith.constant 0 : i32
    return %arg0, %c0_i32, %c0_i32_0 : i32, i32, i32
  }
}

</mosaic_0001>

<llo_original>
// kernel: tpu_custom_call.1
$region0: #{tpu_custom_call.1}
  #allocation0 [shape = 'u32[]', space=smem, size = 0x4, offset = 0x4, fixed_abs, tag = 'smem constant byte address 0x4 - core index']
  #allocation1 [shape = 'u32[144,128]{1,0:T(1,128)}', space=vmem, size = 0x12000, scoped, tag = 'internal scratch']
  #allocation2 [shape = 'f32[1,16]{1,0:T(1,128)}', space=vmem, size = 0x200, scoped, tag = 'scratch operand']
  %s0 = inlined_call_operand.hbm [shape: f32[2,1,16,256], index: 0, kind: input, shape index: {}]
  %s1 = inlined_call_operand.hbm [shape: f32[16,128], index: 1, kind: input, shape index: {}]
  %s2 = inlined_call_operand.vmem [shape: f32[1,128], index: 2, kind: input, shape index: {}]
  %s3 = inlined_call_operand.hbm [shape: f32[2,1,128], index: 3, kind: output, shape index: {}]
  %s4 = sld [smem:[#allocation0]]
  $region61: #{tpu_custom_call.1} parent=0
    _
  %s6 = ssub.s32 1, %s4
  %s7 = scalar_select 0, %s6, %s4
  $region1: #{tpu_custom_call.1} parent=0
    #allocation3 [shape = 'u8[32768]{0}', space=vmem, size = 0x8000, scoped, tag = 'input window, operand 0']
    #allocation4 [shape = 's32[2]{0}', space=sflag, size = 0x8, scoped, tag = 'scoped memory for tpu_custom_call.1']
    #allocation5 [shape = 's32[2]{0}', space=sflag, size = 0x8, scoped, tag = 'scoped memory for tpu_custom_call.1']
    #allocation6 [shape = 'u8[8192]{0}', space=vmem, size = 0x2000, scoped, tag = 'input window, operand 1, single buffered']
    #allocation7 [shape = 's32[1]{0}', space=sflag, size = 0x4, scoped, tag = 'scoped memory for tpu_custom_call.1']
    #allocation8 [shape = 'u8[1024]{0}', space=vmem, size = 0x400, scoped, tag = 'output window, operand 0']
    %8 = vsyncpa [#allocation4], 0
    %s9 = scalar_lea.sflag [#allocation4], 1
    %10 = vsyncpa %s9, 0
    %11 = vsyncpa [#allocation7], 0
    %12 = vsyncpa [#allocation5], 0
    %s13 = scalar_lea.sflag [#allocation5], 1
    %14 = vsyncpa %s13, 0
    loop: start=0, step=1, limit=4
    $region2: #{tpu_custom_call.1} parent=1 // loop_pre_header
      _
    $region3: #{tpu_custom_call.1} parent=1 // loop_header
      %s16 = sphi 0, %s20
      %p17 = scmp.ge.s32.totalorder %s16, 4
      %s23 = sphi 0, %s35
      %s24 = sphi 0, %s31
      %s25 = sphi 0, %s23
      %s26 = sphi 0, %s24
      %s27 = sphi 0, %s25
      %s28 = sphi 0, %s26
      %s40 = sphi 0, %s42
      %s43 = sphi 0, %s40
      %s44 = sphi 0, %s43
      %s60 = sphi 0, %s44
      %s64 = sphi 0, %s64
      %s66 = sphi 0, %s64
      %s67 = sphi 0, %s66
      %s81 = sphi 0, %s67
      %s85 = sphi 0, %s85
      %s87 = sphi 0, %s85
      %s88 = sphi 0, %s87
      %s102 = sphi 0, %s88
      %s108 = sphi 0, %s110
      %s111 = sphi 0, %s108
      %s112 = sphi 0, %s111
      %s128 = sphi 0, %s112
    $region4: #{tpu_custom_call.1} parent=1 // loop_header_branch
      %19 = sbr.rel (%p17) target = $region8
    $region5: #{tpu_custom_call.1} parent=1 // loop_body
      %s21 = ssub.s32 %s16, 1
      %s22 = ssub.s32 %s16, 2
      %s29 = sadd.s32 1, %s24
      %p30 = scmp.ge.s32.totalorder %s29, 1
      %s31 = scalar_select %p30, 0, %s29
      %s32 = sadd.s32 1, %s23
      %s33 = scalar_select %p30, %s32, %s23
      %p34 = scmp.ge.s32.totalorder %s33, 2
      %s35 = scalar_select %p34, 0, %s33
      %s36 = ssub.s32 %s23, %s35
      %s37 = ssub.s32 %s24, %s31
      %s38 = sor.u32 %s36, %s37
      %p39 = scmp.eq.s32.totalorder %s38, 0
      %s41 = sadd.s32 %s40, 1
      %s42 = scalar_select %p39, %s40, %s41
      %p45 = pneg %p39
      %p46 = scmp.eq.s32.totalorder %s16, 1
      %p47 = por %p45, %p46
      %p48 = scmp.ne.s32.totalorder %s40, %s43
      %p49 = scmp.eq.s32.totalorder %s16, 0
      %p50 = por %p48, %p49
      %p51 = scmp.ne.s32.totalorder %s40, %s43
      %p52 = scmp.eq.s32.totalorder %s21, 1
      %p53 = por %p51, %p52
      %p54 = scmp.ne.s32.totalorder %s43, %s44
      %p55 = scmp.eq.s32.totalorder %s21, 0
      %p56 = por %p54, %p55
      %p57 = scmp.ne.s32.totalorder %s43, %s44
      %p58 = scmp.eq.s32.totalorder %s22, 1
      %p59 = por %p57, %p58
      %p61 = scmp.ne.s32.totalorder %s44, %s60
      %p62 = scmp.eq.s32.totalorder %s22, 0
      %p63 = por %p61, %p62
      %s65 = sadd.s32 %s64, 1
      %p68 = scmp.eq.s32.totalorder %s16, 1
      %p69 = scmp.ne.s32.totalorder %s64, %s66
      %p70 = scmp.eq.s32.totalorder %s16, 0
      %p71 = por %p69, %p70
      %p72 = scmp.ne.s32.totalorder %s64, %s66
      %p73 = scmp.eq.s32.totalorder %s21, 1
      %p74 = por %p72, %p73
      %p75 = scmp.ne.s32.totalorder %s66, %s67
      %p76 = scmp.eq.s32.totalorder %s21, 0
      %p77 = por %p75, %p76
      %p78 = scmp.ne.s32.totalorder %s66, %s67
      %p79 = scmp.eq.s32.totalorder %s22, 1
      %p80 = por %p78, %p79
      %p82 = scmp.ne.s32.totalorder %s67, %s81
      %p83 = scmp.eq.s32.totalorder %s22, 0
      %p84 = por %p82, %p83
      %s86 = sadd.s32 %s85, 1
      %p89 = scmp.eq.s32.totalorder %s16, 1
      %p90 = scmp.ne.s32.totalorder %s85, %s87
      %p91 = scmp.eq.s32.totalorder %s16, 0
      %p92 = por %p90, %p91
      %p93 = scmp.ne.s32.totalorder %s85, %s87
      %p94 = scmp.eq.s32.totalorder %s21, 1
      %p95 = por %p93, %p94
      %p96 = scmp.ne.s32.totalorder %s87, %s88
      %p97 = scmp.eq.s32.totalorder %s21, 0
      %p98 = por %p96, %p97
      %p99 = scmp.ne.s32.totalorder %s87, %s88
      %p100 = scmp.eq.s32.totalorder %s22, 1
      %p101 = por %p99, %p100
      %p103 = scmp.ne.s32.totalorder %s88, %s102
      %p104 = scmp.eq.s32.totalorder %s22, 0
      %p105 = por %p103, %p104
      %s106 = ssub.s32 %s23, %s35
      %p107 = scmp.eq.s32.totalorder %s106, 0
      %s109 = sadd.s32 %s108, 1
      %s110 = scalar_select %p107, %s108, %s109
      %p113 = pneg %p107
      %p114 = scmp.eq.s32.totalorder %s16, 1
      %p115 = por %p113, %p114
      %p116 = scmp.ne.s32.totalorder %s108, %s111
      %p117 = scmp.eq.s32.totalorder %s16, 0
      %p118 = por %p116, %p117
      %p119 = scmp.ne.s32.totalorder %s108, %s111
      %p120 = scmp.eq.s32.totalorder %s21, 1
      %p121 = por %p119, %p120
      %p122 = scmp.ne.s32.totalorder %s111, %s112
      %p123 = scmp.eq.s32.totalorder %s21, 0
      %p124 = por %p122, %p123
      %p125 = scmp.ne.s32.totalorder %s111, %s112
      %p126 = scmp.eq.s32.totalorder %s22, 1
      %p127 = por %p125, %p126
      %p129 = scmp.ne.s32.totalorder %s112, %s128
      %p130 = scmp.eq.s32.totalorder %s22, 0
      %p131 = por %p129, %p130
      %p132 = scmp.le.s32.totalorder 1, %s16
      %p133 = scmp.lt.s32.totalorder %s16, 3
      %p134 = pnand %p132, %p133
      %p135 = pneg %p134
      // Predicated region
      $region9: #{tpu_custom_call.1} parent=5 // pred_check
        _
      $region10: #{tpu_custom_call.1} parent=5 // pred_check_branch
        %137 = sbr.rel (%p134) target = $region12
      $region11: #{tpu_custom_call.1} parent=5 // pred_region
        %s138 = ssub.s32 %s16, 1
        // Predicated region
        $region13: #{tpu_custom_call.1} parent=11 // pred_check
          %p139 = pneg %p77
        $region14: #{tpu_custom_call.1} parent=11 // pred_check_branch
          %141 = sbr.rel (%p139) target = $region16
        $region15: #{tpu_custom_call.1} parent=11 // pred_region
          %s143 = ssub.s32 256, 256
          %144 = vsyncadd [#allocation7], %s143
          %s145 = sshll.u32 [#allocation6], 4
          %s146 = int_to_ptr.vmem [resolvable:$true] %s145
          %151 = dma.hbm_to_vmem [thread:$0]  %s1, 256, %s146, [#allocation7], 128, 128, 8
        $region16: #{tpu_custom_call.1} parent=11 // pred_fallthru
          _
        // Predicated region
        $region17: #{tpu_custom_call.1} parent=11 // pred_check
          %p152 = pneg %p98
        $region18: #{tpu_custom_call.1} parent=11 // pred_check_branch
          %154 = sbr.rel (%p152) target = $region20
        $region19: #{tpu_custom_call.1} parent=11 // pred_region
          _
        $region20: #{tpu_custom_call.1} parent=11 // pred_fallthru
          _
      $region12: #{tpu_custom_call.1} parent=5 // pred_fallthru
        _
      %p155 = scmp.lt.s32.totalorder %s16, 2
      // Predicated region
      $region21: #{tpu_custom_call.1} parent=5 // pred_check
        %p156 = pneg %p155
      $region22: #{tpu_custom_call.1} parent=5 // pred_check_branch
        %158 = sbr.rel (%p156) target = $region24
      $region23: #{tpu_custom_call.1} parent=5 // pred_region
        // Predicated region
        $region25: #{tpu_custom_call.1} parent=23 // pred_check
          %p159 = pneg %p50
        $region26: #{tpu_custom_call.1} parent=23 // pred_check_branch
          %161 = sbr.rel (%p159) target = $region28
        $region27: #{tpu_custom_call.1} parent=23 // pred_region
          %s162 = sand.u32 %s40, 1
          %s163 = scalar_lea.sflag [#allocation4], %s162
          %s164 = sand.u32 %s40, 1
          %s165 = smul.addr %s164, 32
          %s166 = scalar_lea.vmem [#allocation3], %s165
          %s167 = smul.u32 2, %s24
          %s169 = ssub.s32 512, 512
          %170 = vsyncadd %s163, %s169
          %s171 = smul.addr %s23, 4
          %s172 = sadd.s32 %s167, %s171
          %s173 = smul.addr %s172, 128
          %s174 = scalar_lea.hbm %s0, %s173
          %s175 = sshll.u32 %s166, 4
          %s176 = int_to_ptr.vmem [resolvable:$true] %s175
          %181 = dma.hbm_to_vmem [thread:$0]  %s174, 512, %s176, %s163, 256, 256, 16
        $region28: #{tpu_custom_call.1} parent=23 // pred_fallthru
          _
      $region24: #{tpu_custom_call.1} parent=5 // pred_fallthru
        _
      %p182 = scmp.le.s32.totalorder 1, %s16
      %p183 = scmp.lt.s32.totalorder %s16, 3
      %p184 = pnand %p182, %p183
      %p185 = pneg %p184
      // Predicated region
      $region29: #{tpu_custom_call.1} parent=5 // pred_check
        _
      $region30: #{tpu_custom_call.1} parent=5 // pred_check_branch
        %187 = sbr.rel (%p184) target = $region32
      $region31: #{tpu_custom_call.1} parent=5 // pred_region
        %s188 = ssub.s32 %s16, 1
        %s189 = sand.u32 %s43, 1
        %s190 = scalar_lea.sflag [#allocation4], %s189
        %s191 = sand.u32 %s43, 1
        %s192 = smul.addr %s191, 32
        %s193 = scalar_lea.vmem [#allocation3], %s192
        // Predicated region
        $region33: #{tpu_custom_call.1} parent=31 // pred_check
          %p194 = pneg %p56
        $region34: #{tpu_custom_call.1} parent=31 // pred_check_branch
          %196 = sbr.rel (%p194) target = $region36
        $region35: #{tpu_custom_call.1} parent=31 // pred_region
          %197 = dma.done %s190, 512
        $region36: #{tpu_custom_call.1} parent=31 // pred_fallthru
          _
        // Predicated region
        $region37: #{tpu_custom_call.1} parent=31 // pred_check
          %p198 = pneg %p77
        $region38: #{tpu_custom_call.1} parent=31 // pred_check_branch
          %200 = sbr.rel (%p198) target = $region40
        $region39: #{tpu_custom_call.1} parent=31 // pred_region
          %201 = dma.done [#allocation7], 256
        $region40: #{tpu_custom_call.1} parent=31 // pred_fallthru
          _
        %s202 = sand.u32 %s43, 1
        %s203 = scalar_lea.sflag [#allocation4], %s202
        %s204 = sand.u32 %s43, 1
        %s205 = smul.addr %s204, 32
        %s206 = scalar_lea.vmem [#allocation3], %s205
        %p207 = pneg %p56
        %p208 = pneg %p53
        %p209 = pneg %p77
        %p210 = pneg %p74
        %p211 = pneg %p98
        %p212 = pneg %p95
        %p213 = pneg %p124
        %p214 = pneg %p121
        %s215 = sand.u32 %s111, 1
        %s216 = scalar_lea.sflag [#allocation5], %s215
        %s217 = sand.u32 %s111, 1
        %s218 = scalar_lea.vmem [#allocation8], %s217
        %s219 = smul.u32 2, %s26
        %p220 = scmp.eq.s32.totalorder %s26, 0
        // Predicated region
        $region41: #{tpu_custom_call.1} parent=31 // pred_check
          %p221 = pneg %p220
        $region42: #{tpu_custom_call.1} parent=31 // pred_check_branch
          %223 = sbr.rel (%p221) target = $region44
        $region43: #{tpu_custom_call.1} parent=31 // pred_region
          %vm224 = vcmask 122880
          %225 = vst.msk [vmem:[#allocation2] sm:$0x1] %vm224, 0.0
        $region44: #{tpu_custom_call.1} parent=31 // pred_fallthru
          _
        %v226 = vld [vmem:[#allocation2] sm:$0x1]
        %v227 = vld [vmem:[%s193] sm:$0xff]
        %v228 = vld [vmem:[%s193 + $0x8] sm:$0xff]
        %v229 = vld [vmem:[%s193 + $0x10] sm:$0xff]
        %v230 = vld [vmem:[%s193 + $0x18] sm:$0xff]
        %v231 = vadd.f32 %v227, %v228
        %232 = vadd.xlane.f32.xlu0 %v231
        %v233 = vpop.xlane.xlu0 %232
        %v234 = vadd.f32 %v229, %v230
        %235 = vadd.xlane.f32.xlu0 %v234
        %v236 = vpop.xlane.xlu0 %235
        %v239 = vlaneseq
        %v240 = vshrl.u32 %v239, 7
        %v241 = vsub.s32 0, %v240
        %v242 = vrot.slane %v233, %v241
        %v243 = vlaneseq
        %v244 = vshrl.u32 %v243, 7
        %v245 = vsub.s32 1, %v244
        %v246 = vrot.slane %v233, %v245
        %v247 = vlaneseq
        %v248 = vshrl.u32 %v247, 7
        %v249 = vsub.s32 2, %v248
        %v250 = vrot.slane %v233, %v249
        %v251 = vlaneseq
        %v252 = vshrl.u32 %v251, 7
        %v253 = vsub.s32 3, %v252
        %v254 = vrot.slane %v233, %v253
        %v255 = vlaneseq
        %v256 = vshrl.u32 %v255, 7
        %v257 = vsub.s32 4, %v256
        %v258 = vrot.slane %v233, %v257
        %v259 = vlaneseq
        %v260 = vshrl.u32 %v259, 7
        %v261 = vsub.s32 5, %v260
        %v262 = vrot.slane %v233, %v261
        %v263 = vlaneseq
        %v264 = vshrl.u32 %v263, 7
        %v265 = vsub.s32 6, %v264
        %v266 = vrot.slane %v233, %v265
        %v267 = vlaneseq
        %v268 = vshrl.u32 %v267, 7
        %v269 = vsub.s32 7, %v268
        %v270 = vrot.slane %v233, %v269
        %v271 = vlaneseq
        %v272 = vshrl.u32 %v271, 7
        %v273 = vsub.s32 0, %v272
        %v274 = vrot.slane %v236, %v273
        %v275 = vlaneseq
        %v276 = vshrl.u32 %v275, 7
        %v277 = vsub.s32 1, %v276
        %v278 = vrot.slane %v236, %v277
        %v279 = vlaneseq
        %v280 = vshrl.u32 %v279, 7
        %v281 = vsub.s32 2, %v280
        %v282 = vrot.slane %v236, %v281
        %v283 = vlaneseq
        %v284 = vshrl.u32 %v283, 7
        %v285 = vsub.s32 3, %v284
        %v286 = vrot.slane %v236, %v285
        %v287 = vlaneseq
        %v288 = vshrl.u32 %v287, 7
        %v289 = vsub.s32 4, %v288
        %v290 = vrot.slane %v236, %v289
        %v291 = vlaneseq
        %v292 = vshrl.u32 %v291, 7
        %v293 = vsub.s32 5, %v292
        %v294 = vrot.slane %v236, %v293
        %v295 = vlaneseq
        %v296 = vshrl.u32 %v295, 7
        %v297 = vsub.s32 6, %v296
        %v298 = vrot.slane %v236, %v297
        %v299 = vlaneseq
        %v300 = vshrl.u32 %v299, 7
        %v301 = vsub.s32 7, %v300
        %v302 = vrot.slane %v236, %v301
        %v303 = vcombine.low %v242, %v246
        %v304 = vcombine.low %v250, %v254
        %v305 = vcombine.low %v258, %v262
        %v306 = vcombine.low %v266, %v270
        %v308 = vunpack.c.l.s4 1966171168
        %v309 = vunpack.c.0.s8 %v308
        %v310 = vlaneseq
        %v311 = vshrl.u32 %v310, 7
        %v312 = vsub.s32 %v309, %v311
        %v313 = vrot.slane %v303, %v312
        %v315 = vunpack.c.l.s4 1966171168
        %v316 = vunpack.c.0.s8 %v315
        %v317 = vlaneseq
        %v318 = vshrl.u32 %v317, 7
        %v319 = vsub.s32 %v316, %v318
        %v320 = vrot.slane %v304, %v319
        %v322 = vunpack.c.l.s4 1966171168
        %v323 = vunpack.c.0.s8 %v322
        %v324 = vlaneseq
        %v325 = vshrl.u32 %v324, 7
        %v326 = vsub.s32 %v323, %v325
        %v327 = vrot.slane %v305, %v326
        %v329 = vunpack.c.l.s4 1966171168
        %v330 = vunpack.c.0.s8 %v329
        %v331 = vlaneseq
        %v332 = vshrl.u32 %v331, 7
        %v333 = vsub.s32 %v330, %v332
        %v334 = vrot.slane %v306, %v333
        %v335 = vcombine.low %v313, %v320
        %v336 = vcombine.low %v327, %v334
        %v338 = vunpack.c.l.s4 1966171168
        %v339 = vunpack.c.0.s8 %v338
        %v340 = vlaneseq
        %v341 = vshrl.u32 %v340, 7
        %v342 = vsub.s32 %v339, %v341
        %v343 = vrot.slane %v335, %v342
        %v345 = vunpack.c.l.s4 1966171168
        %v346 = vunpack.c.0.s8 %v345
        %v347 = vlaneseq
        %v348 = vshrl.u32 %v347, 7
        %v349 = vsub.s32 %v346, %v348
        %v350 = vrot.slane %v336, %v349
        %v351 = vcombine.low %v343, %v350
        %v352 = vcombine.low %v274, %v278
        %v353 = vcombine.low %v282, %v286
        %v354 = vcombine.low %v290, %v294
        %v355 = vcombine.low %v298, %v302
        %v357 = vunpack.c.l.s4 1966171168
        %v358 = vunpack.c.0.s8 %v357
        %v359 = vlaneseq
        %v360 = vshrl.u32 %v359, 7
        %v361 = vsub.s32 %v358, %v360
        %v362 = vrot.slane %v352, %v361
        %v364 = vunpack.c.l.s4 1966171168
        %v365 = vunpack.c.0.s8 %v364
        %v366 = vlaneseq
        %v367 = vshrl.u32 %v366, 7
        %v368 = vsub.s32 %v365, %v367
        %v369 = vrot.slane %v353, %v368
        %v371 = vunpack.c.l.s4 1966171168
        %v372 = vunpack.c.0.s8 %v371
        %v373 = vlaneseq
        %v374 = vshrl.u32 %v373, 7
        %v375 = vsub.s32 %v372, %v374
        %v376 = vrot.slane %v354, %v375
        %v378 = vunpack.c.l.s4 1966171168
        %v379 = vunpack.c.0.s8 %v378
        %v380 = vlaneseq
        %v381 = vshrl.u32 %v380, 7
        %v382 = vsub.s32 %v379, %v381
        %v383 = vrot.slane %v355, %v382
        %v384 = vcombine.low %v362, %v369
        %v385 = vcombine.low %v376, %v383
        %v387 = vunpack.c.l.s4 1966171168
        %v388 = vunpack.c.0.s8 %v387
        %v389 = vlaneseq
        %v390 = vshrl.u32 %v389, 7
        %v391 = vsub.s32 %v388, %v390
        %v392 = vrot.slane %v384, %v391
        %v394 = vunpack.c.l.s4 1966171168
        %v395 = vunpack.c.0.s8 %v394
        %v396 = vlaneseq
        %v397 = vshrl.u32 %v396, 7
        %v398 = vsub.s32 %v395, %v397
        %v399 = vrot.slane %v385, %v398
        %v400 = vcombine.low %v392, %v399
        %401 = vset.pattern.permute.xlu0 0
        %402 = vperm.xlu0 %401, %v351
        %v403 = vpop.permute.xlu0 %402
        %404 = vset.pattern.permute.xlu0 0
        %405 = vperm.xlu0 %404, %v400
        %v406 = vpop.permute.xlu0 %405
        %v407 = vlaneseq
        %v408 = vand.u32 %v407, 127
        %v409 = vlaneseq
        %v410 = vshrl.u32 %v409, 7
        %v411 = vsub.s32 %v408, %v410
        %v412 = vrot.slane %v403, %v411
        %v413 = vadd.s32 %v408, 4294967288
        %v414 = vlaneseq
        %v415 = vshrl.u32 %v414, 7
        %v416 = vsub.s32 %v413, %v415
        %v417 = vrot.slane %v406, %v416
        %vm418 = vcmask 130112
        %v419 = vsel %vm418, %v417, %v412
        %v421 = vunpack.c.l.s4 1966171168
        %v422 = vunpack.c.0.s8 %v421
        %v423 = vlaneseq
        %v424 = vshrl.u32 %v423, 7
        %v425 = vsub.s32 %v422, %v424
        %v426 = vrot.slane %v419, %v425
        %v428 = vunpack.c.l.s4 1966171168
        %v429 = vunpack.c.0.s8 %v428
        %v430 = vlaneseq
        %v431 = vshrl.u32 %v430, 7
        %v432 = vsub.s32 %v429, %v431
        %v433 = vrot.slane %v426, %v432
        %v435 = vadd.f32 %v226, %v433
        %vm436 = vcmask 122880
        %437 = vst.msk [vmem:[#allocation2] sm:$0x1] %vm436, %v435
        // Predicated region
        $region45: #{tpu_custom_call.1} parent=31 // pred_check
          %p438 = pneg %p220
        $region46: #{tpu_custom_call.1} parent=31 // pred_check_branch
          %440 = sbr.rel (%p438) target = $region48
        $region47: #{tpu_custom_call.1} parent=31 // pred_region
          %v441 = vld [vmem:[#allocation2] sm:$0x1]
          %v442 = vmul.f32 %v441, 0.00390625
          %v443 = vld [vmem:[#allocation6] sm:$0xff]
          %v444 = vld [vmem:[#allocation6 + $0x8] sm:$0xff]
          %v445 = vld [vmem:[%s2] sm:$0x1]
          %vm446 = vcmask 130048
          %v448 = vsel %vm446, %v442, 0
          %450 = vmatprep.subr.mxu0 0.0
          %451 = vmatpush1.msra.mxu0 %v443
          %452 = vmatprep.subr.mxu0 0.0
          %453 = vmatpush1.msra.mxu0 %v444
          %454 = vmatprep.subr.mxu0 0.0
          %455 = vmatpush1.msra.mxu0 0.0
          %456 = vmatprep.subr.mxu0 0.0
          %457 = vmatpush1.msra.mxu0 0.0
          %458 = vmatprep.subr.mxu0 0.0
          %459 = vmatpush1.msra.mxu0 0.0
          %460 = vmatprep.subr.mxu0 0.0
          %461 = vmatpush1.msra.mxu0 0.0
          %462 = vmatprep.subr.mxu0 0.0
          %463 = vmatpush1.msra.mxu0 0.0
          %464 = vmatprep.subr.mxu0 0.0
          %465 = vmatpush1.msra.mxu0 0.0
          %466 = vmatprep.subr.mxu0 0.0
          %467 = vmatpush1.msra.mxu0 0.0
          %468 = vmatprep.subr.mxu0 0.0
          %469 = vmatpush1.msra.mxu0 0.0
          %470 = vmatprep.subr.mxu0 0.0
          %471 = vmatpush1.msra.mxu0 0.0
          %472 = vmatprep.subr.mxu0 0.0
          %473 = vmatpush1.msra.mxu0 0.0
          %474 = vmatprep.subr.mxu0 0.0
          %475 = vmatpush1.msra.mxu0 0.0
          %476 = vmatprep.subr.mxu0 0.0
          %477 = vmatpush1.msra.mxu0 0.0
          %478 = vmatprep.subr.mxu0 0.0
          %479 = vmatpush1.msra.mxu0 0.0
          %480 = vmatprep.subr.mxu0 0.0
          %481 = vmatpush1.msra.mxu0 0.0
          %482 = vmatprep.subr.mxu0 0.0
          %483 = vmatpush1.msra.mxu0 0.0
          %484 = vmatprep.subr.mxu0 0.0
          %485 = vmatpush1.msra.mxu0 0.0
          %486 = vmatprep.subr.mxu0 0.0
          %487 = vmatpush1.msra.mxu0 0.0
          %488 = vmatprep.subr.mxu0 0.0
          %489 = vmatpush1.msra.mxu0 0.0
          %490 = vmatprep.subr.mxu0 0.0
          %491 = vmatpush1.msra.mxu0 0.0
          %492 = vmatprep.subr.mxu0 0.0
          %493 = vmatpush1.msra.mxu0 0.0
          %494 = vmatprep.subr.mxu0 0.0
          %495 = vmatpush1.msra.mxu0 0.0
          %496 = vmatprep.subr.mxu0 0.0
          %497 = vmatpush1.msra.mxu0 0.0
          %498 = vmatprep.subr.mxu0 0.0
          %499 = vmatpush1.msra.mxu0 0.0
          %500 = vmatprep.subr.mxu0 0.0
          %501 = vmatpush1.msra.mxu0 0.0
          %502 = vmatprep.subr.mxu0 0.0
          %503 = vmatpush1.msra.mxu0 0.0
          %504 = vmatprep.subr.mxu0 0.0
          %505 = vmatpush1.msra.mxu0 0.0
          %506 = vmatprep.subr.mxu0 0.0
          %507 = vmatpush1.msra.mxu0 0.0
          %508 = vmatprep.subr.mxu0 0.0
          %509 = vmatpush1.msra.mxu0 0.0
          %510 = vmatprep.subr.mxu0 0.0
          %511 = vmatpush1.msra.mxu0 0.0
          %512 = vmatprep.subr.mxu0 0.0
          %513 = vmatpush1.msra.mxu0 0.0
          %514 = vmatprep.mubr.f32.mxu0 0.0
          %515 = vmatmul.mubr.f32.gmra.mrb[0].mxu0 %v448
          %v516 = vpop.f32.mrb[0].mxu0
          %v517 = vadd.f32 %v445, %v516
          %v518 = vpop.f32.mrb[0].mxu0
          %519 = vdwg.mxu0
          %520 = vst [vmem:[%s218] sm:$0x1] %v517
        $region48: #{tpu_custom_call.1} parent=31 // pred_fallthru
          _
        %s521 = sand.u32 %s111, 1
        %s522 = scalar_lea.sflag [#allocation5], %s521
        %s523 = sand.u32 %s111, 1
        %s524 = scalar_lea.vmem [#allocation8], %s523
        // Predicated region
        $region49: #{tpu_custom_call.1} parent=31 // pred_check
          %p525 = pneg %p121
        $region50: #{tpu_custom_call.1} parent=31 // pred_check_branch
          %527 = sbr.rel (%p525) target = $region52
        $region51: #{tpu_custom_call.1} parent=31 // pred_region
          %s529 = ssub.s32 16, 16
          %530 = vsyncadd %s522, %s529
          %s531 = smul.addr %s25, 16
          %s532 = scalar_lea.hbm %s3, %s531
          %s534 = sshll.u32 %s524, 4
          %s535 = int_to_ptr.vmem [resolvable:$true] %s534
          %537 = dma.vmem_to_hbm [thread:$0]  %s535, 16, %s532, %s522
        $region52: #{tpu_custom_call.1} parent=31 // pred_fallthru
          _
      $region32: #{tpu_custom_call.1} parent=5 // pred_fallthru
        _
      %p538 = scmp.le.s32.totalorder 2, %s16
      // Predicated region
      $region53: #{tpu_custom_call.1} parent=5 // pred_check
        %p539 = pneg %p538
      $region54: #{tpu_custom_call.1} parent=5 // pred_check_branch
        %541 = sbr.rel (%p539) target = $region56
      $region55: #{tpu_custom_call.1} parent=5 // pred_region
        %s542 = ssub.s32 %s16, 2
        // Predicated region
        $region57: #{tpu_custom_call.1} parent=55 // pred_check
          %p543 = pneg %p127
        $region58: #{tpu_custom_call.1} parent=55 // pred_check_branch
          %545 = sbr.rel (%p543) target = $region60
        $region59: #{tpu_custom_call.1} parent=55 // pred_region
          %s546 = sand.u32 %s112, 1
          %s547 = scalar_lea.sflag [#allocation5], %s546
          %s548 = sand.u32 %s112, 1
          %s549 = scalar_lea.vmem [#allocation8], %s548
          %550 = dma.done %s547, 16
        $region60: #{tpu_custom_call.1} parent=55 // pred_fallthru
          _
      $region56: #{tpu_custom_call.1} parent=5 // pred_fallthru
        _
    $region6: #{tpu_custom_call.1} parent=1 // loop_footer
      %s20 = sadd.s32 1, %s16
    $region7: #{tpu_custom_call.1} parent=1 // loop_footer_branch
      %15 = sbr.rel target = $region3
    $region8: #{tpu_custom_call.1} parent=1 // loop_exit
      _
    %551 = vsyncpa [#allocation4], 1
    %s552 = scalar_lea.sflag [#allocation4], 1
    %553 = vsyncpa %s552, 1
    %554 = vsyncpa [#allocation7], 1
    %555 = vsyncpa [#allocation5], 1
    %s556 = scalar_lea.sflag [#allocation5], 1
    %557 = vsyncpa %s556, 1

</llo_original>
